<compile_context>
chip_gen: v5e
topology: v5e:2x2
jax: 0.10.0
libtpu: 0.0.40
codegen_flags: <defaults>
</compile_context>

<pallas_src>
import jax
import jax.numpy as jnp
import numpy as np
from jax.experimental import pallas as pl
from jax.experimental.pallas import tpu as pltpu

IN_F, HID, OUT_F = 32, 64, 1


def _round_up(x, m):
    return (x + m - 1) // m * m


# ---------------------------------------------------------------------------
# Deterministic parameter init (mimics layer_init: orthogonal weight * std,
# constant-zero bias).  Weights kept in PyTorch [out, in] layout.
# ---------------------------------------------------------------------------
def orthogonal_init(key, out_features, in_features, std):
    rows, cols = out_features, in_features
    flat = jax.random.normal(key, (max(rows, cols), min(rows, cols)), jnp.float32)
    q, r = jnp.linalg.qr(flat)
    q = q * jnp.sign(jnp.diag(r))          # make decomposition unique
    if rows < cols:
        q = q.T
    return q[:rows, :cols] * std           # [out, in], like torch


def make_params(seed=0):
    k1, k2, k3 = jax.random.split(jax.random.PRNGKey(seed), 3)
    std = float(np.sqrt(2.0))
    w1 = orthogonal_init(k1, HID, IN_F, std)      # [64, 32]
    b1 = jnp.zeros((HID,), jnp.float32)
    w2 = orthogonal_init(k2, HID, HID, std)       # [64, 64]
    b2 = jnp.zeros((HID,), jnp.float32)
    w3 = orthogonal_init(k3, OUT_F, HID, 1.0)     # [1, 64]
    b3 = jnp.zeros((OUT_F,), jnp.float32)
    return w1, b1, w2, b2, w3, b3


# ---------------------------------------------------------------------------
# Kernel: one batch tile per grid step.  x tile arrives batch-major
# [TILE_B, 32] straight from HBM; one on-chip transpose makes the activations
# feature-major [F, TILE_B] (batch on lanes) so every layer is W @ act and the
# output block is a lane-dense [1, TILE_B] row.  Weights/biases are
# VMEM-resident across the grid.
# ---------------------------------------------------------------------------
def critic_kernel(x_ref, w1_ref, b1_ref, w2_ref, b2_ref, w3c_ref, b3_ref, o_ref):
    cdt = w1_ref.dtype                         # MXU-input dtype (f32 or bf16)
    # Transpose in f32 (XLU; nearly free here), then cast for the MXU.
    x = x_ref[...].astype(jnp.float32).T                                # [32, TB]
    h1 = jnp.tanh(
        jnp.dot(w1_ref[...], x.astype(cdt), preferred_element_type=jnp.float32)
        + b1_ref[...]
    )                                                                   # [64, TB] f32
    h2 = jnp.tanh(
        jnp.dot(w2_ref[...], h1.astype(cdt), preferred_element_type=jnp.float32)
        + b2_ref[...]
    )                                                                   # [64, TB] f32
    # Linear(64,1) head: VPU multiply + sublane reduction (XLU) instead of a
    # degenerate M=1 MXU matmul; result is a lane-dense [1, TB] row.
    v = jnp.sum(h2 * w3c_ref[...], axis=0, keepdims=True) + b3_ref[0, 0]
    o_ref[...] = v.astype(o_ref.dtype)


def critic_forward(x, params, *, max_tile_b=8192, use_bf16_matmul=False):
    """x: [B, 32] (f32 or bf16).  Returns value estimates [B, 1] float32.

    use_bf16_matmul: feed the two MXU dots bf16 inputs (f32 accumulate, f32
    tanh/head) -- fast path for bf16-native v6e/v7x MXUs, still safe on v5e.
    Accuracy vs the f32 path is ~1e-2 relative.
    """
    w1, b1, w2, b2, w3, b3 = params
    B = x.shape[0]
    assert x.shape[1] == IN_F

    # --- batch tiling: <~128 padded rows per tile, and >=2 tiles whenever the
    # batch allows it so the "parallel" axis can shard across both v7x TCs.
    num_tiles = max(1, pl.cdiv(_round_up(B, 128), max_tile_b))
    if num_tiles == 1 and B >= 256:
        num_tiles = 2
    tile_b = _round_up(pl.cdiv(B, num_tiles), 128)
    num_tiles = pl.cdiv(B, tile_b)
    b_pad = num_tiles * tile_b

    # x stays batch-major [B, 32] in HBM (no staging transpose copy).  Only
    # zero-pad the ragged remainder; aligned batches pass through untouched.
    if b_pad != B:
        x = jnp.pad(x, ((0, b_pad - B), (0, 0)))

    mxu_dtype = jnp.bfloat16 if use_bf16_matmul else jnp.float32
    w1c = w1.astype(mxu_dtype)
    w2c = w2.astype(mxu_dtype)
    # Column-shaped small operands so they broadcast over [F, TILE_B].
    b1c = b1.reshape(HID, 1)
    b2c = b2.reshape(HID, 1)
    w3c = w3.reshape(HID, 1)            # Linear(64,1) weight as an f32 column
    b3s = b3.reshape(1, 1)              # scalar -> SMEM

    full = lambda i: (0, 0)             # resident weights: constant block index
    wbytes = (w1c.size * w1c.dtype.itemsize + w2c.size * w2c.dtype.itemsize
              + 4 * (3 * HID + 1))
    cost = pl.CostEstimate(
        flops=2 * b_pad * (IN_F * HID + HID * HID + HID),
        transcendentals=2 * HID * b_pad,
        bytes_accessed=b_pad * (IN_F * x.dtype.itemsize + 4) + wbytes,
    )

    out = pl.pallas_call(
        critic_kernel,
        out_shape=jax.ShapeDtypeStruct((1, b_pad), jnp.float32),
        grid=(num_tiles,),
        in_specs=[
            pl.BlockSpec((tile_b, IN_F), lambda i: (i, 0)),      # x tile (pipelined)
            pl.BlockSpec((HID, IN_F), full),                     # W1 (resident)
            pl.BlockSpec((HID, 1), full),                        # b1
            pl.BlockSpec((HID, HID), full),                      # W2
            pl.BlockSpec((HID, 1), full),                        # b2
            pl.BlockSpec((HID, 1), full),                        # w3 column
            pl.BlockSpec(memory_space=pltpu.MemorySpace.SMEM),   # b3 scalar
        ],
        out_specs=pl.BlockSpec((1, tile_b), lambda i: (0, i)),   # lane-dense row
        compiler_params=pltpu.CompilerParams(
            dimension_semantics=("parallel",),   # shard batch across v7x TCs
        ),
        cost_estimate=cost,
    )(x, w1c, b1c, w2c, b2c, w3c, b3s)

    return out[0, :B].reshape(B, 1)


# ---------------------------------------------------------------------------
if __name__ == "__main__":
    params = make_params(seed=0)
    w1, b1, w2, b2, w3, b3 = params

    def ref_forward(xx):  # pure-JAX reference (PyTorch semantics: x @ W.T + b)
        h = jnp.tanh(xx @ w1.T + b1)
        h = jnp.tanh(h @ w2.T + b2)
        return h @ w3.T + b3

    # Small demo batch, f32 path (bit-accurate to ~1e-5).
    B = 8
    x = jax.random.normal(jax.random.PRNGKey(0), (B, IN_F), jnp.float32)
    value = jax.block_until_ready(critic_forward(x, params))
    np.testing.assert_allclose(np.asarray(value), np.asarray(ref_forward(x)),
                               rtol=1e-5, atol=1e-5)
    assert value.shape == (B, 1)

    # Ragged batch -> multi-tile grid (2 tiles of 256, zero-padded remainder).
    B2 = 300
    x2 = jax.random.normal(jax.random.PRNGKey(1), (B2, IN_F), jnp.float32)
    value2 = jax.block_until_ready(critic_forward(x2, params))
    np.testing.assert_allclose(np.asarray(value2), np.asarray(ref_forward(x2)),
                               rtol=1e-5, atol=1e-5)
    assert value2.shape == (B2, 1)

    # bf16 MXU fast path (v6e/v7x); f32 accumulate + f32 tanh -> loose tolerance.
    value3 = jax.block_until_ready(critic_forward(x2, params, use_bf16_matmul=True))
    np.testing.assert_allclose(np.asarray(value3), np.asarray(ref_forward(x2)),
                               rtol=5e-2, atol=5e-2)

    # bf16-shipped inputs (halves the dominant HBM stream on v5e), f32 weights.
    value4 = jax.block_until_ready(critic_forward(x2.astype(jnp.bfloat16), params))
    np.testing.assert_allclose(np.asarray(value4), np.asarray(ref_forward(x2)),
                               rtol=5e-2, atol=5e-2)

    print("KERNEL_OK")
</pallas_src>

<mosaic_0001>
module attributes {stable_mosaic.version = 11 : i64} {
  func.func @critic_kernel(%arg0: i32, %arg1: memref<128x32xf32, #tpu.memory_space<vmem>>, %arg2: memref<64x32xf32, #tpu.memory_space<vmem>>, %arg3: memref<64x1xf32, #tpu.memory_space<vmem>>, %arg4: memref<64x64xf32, #tpu.memory_space<vmem>>, %arg5: memref<64x1xf32, #tpu.memory_space<vmem>>, %arg6: memref<64x1xf32, #tpu.memory_space<vmem>>, %arg7: memref<1x1xf32, #tpu.memory_space<smem>>, %arg8: memref<1x128xf32, #tpu.memory_space<vmem>>) attributes {dimension_semantics = [#tpu.dimension_semantics<parallel>], iteration_bounds = array<i64: 1>, scalar_prefetch = 0 : i64, scratch_operands = 0 : i64, tpu.core_type = #tpu.core_type<tc>, window_params = [{transform_indices = @transform_0, window_bounds = array<i64: 128, 32>}, {pipeline_mode = #tpu.pipeline_mode<synchronous>, transform_indices = @transform_1, window_bounds = array<i64: 64, 32>}, {pipeline_mode = #tpu.pipeline_mode<synchronous>, transform_indices = @transform_2, window_bounds = array<i64: 64, 1>}, {pipeline_mode = #tpu.pipeline_mode<synchronous>, transform_indices = @transform_3, window_bounds = array<i64: 64, 64>}, {pipeline_mode = #tpu.pipeline_mode<synchronous>, transform_indices = @transform_4, window_bounds = array<i64: 64, 1>}, {pipeline_mode = #tpu.pipeline_mode<synchronous>, transform_indices = @transform_5, window_bounds = array<i64: 64, 1>}, {transform_indices = @transform_6, window_bounds = array<i64: 1, 1>}, {transform_indices = @transform_7, window_bounds = array<i64: 1, 128>}]} {
    %c0 = arith.constant 0 : index
    %c0_0 = arith.constant 0 : index
    %0 = vector.load %arg1[%c0, %c0_0] : memref<128x32xf32, #tpu.memory_space<vmem>>, vector<128x32xf32>
    %1 = tpu.transpose %0, [1, 0] : vector<128x32xf32> -> vector<32x128xf32>
    %c0_1 = arith.constant 0 : index
    %c0_2 = arith.constant 0 : index
    %2 = vector.load %arg2[%c0_1, %c0_2] : memref<64x32xf32, #tpu.memory_space<vmem>>, vector<64x32xf32>
    %cst = arith.constant dense<0.000000e+00> : vector<64x128xf32>
    %3 = tpu.matmul %2, %1, %cst {dimension_numbers = #tpu.dot_dimension_numbers<[1], [0], [0], [1], [0, 0, 1, 1], [], []>} : vector<64x32xf32>, vector<32x128xf32>, vector<64x128xf32> -> vector<64x128xf32>
    %c0_3 = arith.constant 0 : index
    %c0_4 = arith.constant 0 : index
    %4 = vector.load %arg3[%c0_3, %c0_4] : memref<64x1xf32, #tpu.memory_space<vmem>>, vector<64x1xf32>
    %5 = vector.broadcast %4 : vector<64x1xf32> to vector<64x128xf32>
    %6 = arith.addf %3, %5 : vector<64x128xf32>
    %7 = math.tanh %6 : vector<64x128xf32>
    %c0_5 = arith.constant 0 : index
    %c0_6 = arith.constant 0 : index
    %8 = vector.load %arg4[%c0_5, %c0_6] : memref<64x64xf32, #tpu.memory_space<vmem>>, vector<64x64xf32>
    %cst_7 = arith.constant dense<0.000000e+00> : vector<64x128xf32>
    %9 = tpu.matmul %8, %7, %cst_7 {dimension_numbers = #tpu.dot_dimension_numbers<[1], [0], [0], [1], [0, 0, 1, 1], [], []>} : vector<64x64xf32>, vector<64x128xf32>, vector<64x128xf32> -> vector<64x128xf32>
    %c0_8 = arith.constant 0 : index
    %c0_9 = arith.constant 0 : index
    %10 = vector.load %arg5[%c0_8, %c0_9] : memref<64x1xf32, #tpu.memory_space<vmem>>, vector<64x1xf32>
    %11 = vector.broadcast %10 : vector<64x1xf32> to vector<64x128xf32>
    %12 = arith.addf %9, %11 : vector<64x128xf32>
    %13 = math.tanh %12 : vector<64x128xf32>
    %c0_10 = arith.constant 0 : index
    %c0_11 = arith.constant 0 : index
    %14 = vector.load %arg6[%c0_10, %c0_11] : memref<64x1xf32, #tpu.memory_space<vmem>>, vector<64x1xf32>
    %15 = vector.broadcast %14 : vector<64x1xf32> to vector<64x128xf32>
    %16 = arith.mulf %13, %15 : vector<64x128xf32>
    %cst_12 = arith.constant dense<0.000000e+00> : vector<128xf32>
    %17 = vector.multi_reduction <add>, %16, %cst_12 [0] : vector<64x128xf32> to vector<128xf32>
    %18 = vector.shape_cast %17 : vector<128xf32> to vector<1x128xf32>
    %c0_13 = arith.constant 0 : index
    %c0_14 = arith.constant 0 : index
    %19 = memref.load %arg7[%c0_13, %c0_14] : memref<1x1xf32, #tpu.memory_space<smem>>
    %20 = vector.broadcast %19 : f32 to vector<1x128xf32>
    %21 = arith.addf %18, %20 : vector<1x128xf32>
    %c0_15 = arith.constant 0 : index
    %c0_16 = arith.constant 0 : index
    %22 = vector.load %arg8[%c0_15, %c0_16] : memref<1x128xf32, #tpu.memory_space<vmem>>, vector<1x128xf32>
    tpu.vector_store %arg8[%c0_15, %c0_16], %21 {strides = array<i32>} : memref<1x128xf32, #tpu.memory_space<vmem>>, vector<1x128xf32>,
    return
  }
  func.func @transform_0(%arg0: i32) -> (i32, i32) {
    %c0_i32 = arith.constant 0 : i32
    %c0_i32_0 = arith.constant 0 : i32
    return %arg0, %c0_i32 : i32, i32
  }
  func.func @transform_1(%arg0: i32) -> (i32, i32) {
    %c0_i32 = arith.constant 0 : i32
    %c0_i32_0 = arith.constant 0 : i32
    %c0_i32_1 = arith.constant 0 : i32
    return %c0_i32, %c0_i32_0 : i32, i32
  }
  func.func @transform_2(%arg0: i32) -> (i32, i32) {
    %c0_i32 = arith.constant 0 : i32
    %c0_i32_0 = arith.constant 0 : i32
    %c0_i32_1 = arith.constant 0 : i32
    return %c0_i32, %c0_i32_0 : i32, i32
  }
  func.func @transform_3(%arg0: i32) -> (i32, i32) {
    %c0_i32 = arith.constant 0 : i32
    %c0_i32_0 = arith.constant 0 : i32
    %c0_i32_1 = arith.constant 0 : i32
    return %c0_i32, %c0_i32_0 : i32, i32
  }
  func.func @transform_4(%arg0: i32) -> (i32, i32) {
    %c0_i32 = arith.constant 0 : i32
    %c0_i32_0 = arith.constant 0 : i32
    %c0_i32_1 = arith.constant 0 : i32
    return %c0_i32, %c0_i32_0 : i32, i32
  }
  func.func @transform_5(%arg0: i32) -> (i32, i32) {
    %c0_i32 = arith.constant 0 : i32
    %c0_i32_0 = arith.constant 0 : i32
    %c0_i32_1 = arith.constant 0 : i32
    return %c0_i32, %c0_i32_0 : i32, i32
  }
  func.func @transform_6(%arg0: i32) -> (i32, i32) {
    %c0_i32 = arith.constant 0 : i32
    %c0_i32_0 = arith.constant 0 : i32
    %c0_i32_1 = arith.constant 0 : i32
    return %c0_i32, %c0_i32_0 : i32, i32
  }
  func.func @transform_7(%arg0: i32) -> (i32, i32) {
    %c0_i32 = arith.constant 0 : i32
    %c0_i32_0 = arith.constant 0 : i32
    return %c0_i32, %arg0 : i32, i32
  }
}

</mosaic_0001>

<llo_original>
// kernel: tpu_custom_call.1
$region0: #{tpu_custom_call.1}
  #allocation0 [shape = 'u32[]', space=smem, size = 0x4, offset = 0x4, fixed_abs, tag = 'smem constant byte address 0x4 - core index']
  #allocation1 [shape = 'u32[72,128]{1,0:T(1,128)}', space=vmem, size = 0x9000, scoped, tag = 'internal scratch']
  #allocation2 [shape = 'f32[1,1]{1,0:T(1,128)S(6)}', space=smem, size = 0x200, scoped, tag = 'scoped memory for tpu_custom_call.1']
  %s0 = inlined_call_operand.vmem [shape: f32[128,32], index: 0, kind: input, shape index: {}]
  %s1 = inlined_call_operand.vmem [shape: f32[64,32], index: 1, kind: input, shape index: {}]
  %s2 = inlined_call_operand.vmem [shape: f32[64,1], index: 2, kind: input, shape index: {}]
  %s3 = inlined_call_operand.vmem [shape: f32[64,64], index: 3, kind: input, shape index: {}]
  %s4 = inlined_call_operand.vmem [shape: f32[64,1], index: 4, kind: input, shape index: {}]
  %s5 = inlined_call_operand.vmem [shape: f32[64,1], index: 5, kind: input, shape index: {}]
  %s6 = inlined_call_operand.<no memory space> [shape: f32[1,1], index: 6, kind: input, shape index: {}]
  %s7 = inlined_call_operand.hbm [shape: f32[1,128], index: 7, kind: output, shape index: {}]
  %s8 = sld [smem:[#allocation0]]
  $region38: #{tpu_custom_call.1} parent=0
    _
  %s10 = ssub.s32 1, %s8
  %s11 = scalar_select 0, %s10, %s8
  %12 = sst [smem:[#allocation2]] %s6
  $region1: #{tpu_custom_call.1} parent=0
    #allocation3 [shape = 'u8[512]{0}', space=vmem, size = 0x400, scoped, tag = 'output window, operand 0, single buffered']
    #allocation4 [shape = 's32[1]{0}', space=sflag, size = 0x4, scoped, tag = 'scoped memory for tpu_custom_call.1']
    %13 = vsyncpa [#allocation4], 0
    // Predicated region
    $region2: #{tpu_custom_call.1} parent=1 // pred_check
      _
    $region3: #{tpu_custom_call.1} parent=1 // pred_check_branch
      %15 = sbr.rel (0) target = $region5
    $region4: #{tpu_custom_call.1} parent=1 // pred_region
      _
    $region5: #{tpu_custom_call.1} parent=1 // pred_fallthru
      _
    // Predicated region
    $region6: #{tpu_custom_call.1} parent=1 // pred_check
      _
    $region7: #{tpu_custom_call.1} parent=1 // pred_check_branch
      %17 = sbr.rel (0) target = $region9
    $region8: #{tpu_custom_call.1} parent=1 // pred_region
      _
    $region9: #{tpu_custom_call.1} parent=1 // pred_fallthru
      _
    // Predicated region
    $region10: #{tpu_custom_call.1} parent=1 // pred_check
      _
    $region11: #{tpu_custom_call.1} parent=1 // pred_check_branch
      %19 = sbr.rel (0) target = $region13
    $region12: #{tpu_custom_call.1} parent=1 // pred_region
      _
    $region13: #{tpu_custom_call.1} parent=1 // pred_fallthru
      _
    // Predicated region
    $region14: #{tpu_custom_call.1} parent=1 // pred_check
      _
    $region15: #{tpu_custom_call.1} parent=1 // pred_check_branch
      %21 = sbr.rel (0) target = $region17
    $region16: #{tpu_custom_call.1} parent=1 // pred_region
      _
    $region17: #{tpu_custom_call.1} parent=1 // pred_fallthru
      _
    // Predicated region
    $region18: #{tpu_custom_call.1} parent=1 // pred_check
      _
    $region19: #{tpu_custom_call.1} parent=1 // pred_check_branch
      %23 = sbr.rel (0) target = $region21
    $region20: #{tpu_custom_call.1} parent=1 // pred_region
      _
    $region21: #{tpu_custom_call.1} parent=1 // pred_fallthru
      _
    // Predicated region
    $region22: #{tpu_custom_call.1} parent=1 // pred_check
      _
    $region23: #{tpu_custom_call.1} parent=1 // pred_check_branch
      %25 = sbr.rel (0) target = $region25
    $region24: #{tpu_custom_call.1} parent=1 // pred_region
      _
    $region25: #{tpu_custom_call.1} parent=1 // pred_fallthru
      _
    // Predicated region
    $region26: #{tpu_custom_call.1} parent=1 // pred_check
      _
    $region27: #{tpu_custom_call.1} parent=1 // pred_check_branch
      %27 = sbr.rel (0) target = $region29
    $region28: #{tpu_custom_call.1} parent=1 // pred_region
      _
    $region29: #{tpu_custom_call.1} parent=1 // pred_fallthru
      _
    %v28 = vld [vmem:[%s0] sm:$0xff]
    %v29 = vld [vmem:[%s0 + $0x8] sm:$0xff]
    %v30 = vld [vmem:[%s0 + $0x10] sm:$0xff]
    %v31 = vld [vmem:[%s0 + $0x18] sm:$0xff]
    %v32 = vld [vmem:[%s0 + $0x20] sm:$0xff]
    %v33 = vld [vmem:[%s0 + $0x28] sm:$0xff]
    %v34 = vld [vmem:[%s0 + $0x30] sm:$0xff]
    %v35 = vld [vmem:[%s0 + $0x38] sm:$0xff]
    %v36 = vld [vmem:[%s0 + $0x40] sm:$0xff]
    %v37 = vld [vmem:[%s0 + $0x48] sm:$0xff]
    %v38 = vld [vmem:[%s0 + $0x50] sm:$0xff]
    %v39 = vld [vmem:[%s0 + $0x58] sm:$0xff]
    %v40 = vld [vmem:[%s0 + $0x60] sm:$0xff]
    %v41 = vld [vmem:[%s0 + $0x68] sm:$0xff]
    %v42 = vld [vmem:[%s0 + $0x70] sm:$0xff]
    %v43 = vld [vmem:[%s0 + $0x78] sm:$0xff]
    %v44 = vld [vmem:[%s1] sm:$0xff]
    %v45 = vld [vmem:[%s1 + $0x8] sm:$0xff]
    %v46 = vld [vmem:[%s1 + $0x10] sm:$0xff]
    %v47 = vld [vmem:[%s1 + $0x18] sm:$0xff]
    %v48 = vld [vmem:[%s1 + $0x20] sm:$0xff]
    %v49 = vld [vmem:[%s1 + $0x28] sm:$0xff]
    %v50 = vld [vmem:[%s1 + $0x30] sm:$0xff]
    %v51 = vld [vmem:[%s1 + $0x38] sm:$0xff]
    %v52 = vld [vmem:[%s2] sm:$0xff]
    %v53 = vld [vmem:[%s2 + $0x8] sm:$0xff]
    %v54 = vld [vmem:[%s2 + $0x10] sm:$0xff]
    %v55 = vld [vmem:[%s2 + $0x18] sm:$0xff]
    %v56 = vld [vmem:[%s2 + $0x20] sm:$0xff]
    %v57 = vld [vmem:[%s2 + $0x28] sm:$0xff]
    %v58 = vld [vmem:[%s2 + $0x30] sm:$0xff]
    %v59 = vld [vmem:[%s2 + $0x38] sm:$0xff]
    %61 = vset.pattern.permute.xlu0 0
    %62 = vperm.xlu0 %61, %v52
    %v63 = vpop.permute.xlu0 %62
    %66 = vset.pattern.permute.xlu0 0
    %67 = vperm.xlu0 %66, %v53
    %v68 = vpop.permute.xlu0 %67
    %71 = vset.pattern.permute.xlu0 0
    %72 = vperm.xlu0 %71, %v54
    %v73 = vpop.permute.xlu0 %72
    %76 = vset.pattern.permute.xlu0 0
    %77 = vperm.xlu0 %76, %v55
    %v78 = vpop.permute.xlu0 %77
    %81 = vset.pattern.permute.xlu0 0
    %82 = vperm.xlu0 %81, %v56
    %v83 = vpop.permute.xlu0 %82
    %86 = vset.pattern.permute.xlu0 0
    %87 = vperm.xlu0 %86, %v57
    %v88 = vpop.permute.xlu0 %87
    %91 = vset.pattern.permute.xlu0 0
    %92 = vperm.xlu0 %91, %v58
    %v93 = vpop.permute.xlu0 %92
    %96 = vset.pattern.permute.xlu0 0
    %97 = vperm.xlu0 %96, %v59
    %v98 = vpop.permute.xlu0 %97
    %vm100 = vcmask 261120
    %v102 = vsel %vm100, %v44, 0
    %v105 = vsel %vm100, %v45, 0
    %v108 = vsel %vm100, %v46, 0
    %v111 = vsel %vm100, %v47, 0
    %v114 = vsel %vm100, %v48, 0
    %v117 = vsel %vm100, %v49, 0
    %v120 = vsel %vm100, %v50, 0
    %v123 = vsel %vm100, %v51, 0
    %v126 = vsel %vm100, %v28, 0
    %v129 = vsel %vm100, %v29, 0
    %v132 = vsel %vm100, %v30, 0
    %v135 = vsel %vm100, %v31, 0
    %v138 = vsel %vm100, %v32, 0
    %v141 = vsel %vm100, %v33, 0
    %v144 = vsel %vm100, %v34, 0
    %v147 = vsel %vm100, %v35, 0
    %v150 = vsel %vm100, %v36, 0
    %v153 = vsel %vm100, %v37, 0
    %v156 = vsel %vm100, %v38, 0
    %v159 = vsel %vm100, %v39, 0
    %v162 = vsel %vm100, %v40, 0
    %v165 = vsel %vm100, %v41, 0
    %v168 = vsel %vm100, %v42, 0
    %v171 = vsel %vm100, %v43, 0
    %173 = vmatpush.xpose.msra.mxu0 %v171
    %174 = vmatpush.xpose.msra.mxu0 %v168
    %175 = vmatpush.xpose.msra.mxu0 %v165
    %176 = vmatpush.xpose.msra.mxu0 %v162
    %177 = vmatpush.xpose.msra.mxu0 %v159
    %178 = vmatpush.xpose.msra.mxu0 %v156
    %179 = vmatpush.xpose.msra.mxu0 %v153
    %180 = vmatpush.xpose.msra.mxu0 %v150
    %181 = vmatpush.xpose.msra.mxu0 %v147
    %182 = vmatpush.xpose.msra.mxu0 %v144
    %183 = vmatpush.xpose.msra.mxu0 %v141
    %184 = vmatpush.xpose.msra.mxu0 %v138
    %185 = vmatpush.xpose.msra.mxu0 %v135
    %186 = vmatpush.xpose.msra.mxu0 %v132
    %187 = vmatpush.xpose.msra.mxu0 %v129
    %188 = vmatpush.xpose.msra.mxu0 %v126
    %189 = vmatmul.f32.gmra.mxu0 %v102
    %v190 = vpop.f32.mrf.mxu0
    %v191 = vadd.f32 %v63, %v190
    %192 = vmatmul.f32.gmra.mxu0 %v105
    %v193 = vpop.f32.mrf.mxu0
    %v194 = vadd.f32 %v68, %v193
    %195 = vmatmul.f32.gmra.mxu0 %v108
    %v196 = vpop.f32.mrf.mxu0
    %v197 = vadd.f32 %v73, %v196
    %198 = vmatmul.f32.gmra.mxu0 %v111
    %v199 = vpop.f32.mrf.mxu0
    %v200 = vadd.f32 %v78, %v199
    %201 = vmatmul.f32.gmra.mxu0 %v114
    %v202 = vpop.f32.mrf.mxu0
    %v203 = vadd.f32 %v83, %v202
    %204 = vmatmul.f32.gmra.mxu0 %v117
    %v205 = vpop.f32.mrf.mxu0
    %v206 = vadd.f32 %v88, %v205
    %207 = vmatmul.f32.gmra.mxu0 %v120
    %v208 = vpop.f32.mrf.mxu0
    %v209 = vadd.f32 %v93, %v208
    %210 = vmatmul.f32.gmra.mxu0 %v123
    %v211 = vpop.f32.mrf.mxu0
    %v212 = vadd.f32 %v98, %v211
    %213 = vdwg.mxu0
    %v214 = vtanh.pop %v191
    %v215 = vtanh.pop %v194
    %v216 = vtanh.pop %v197
    %v217 = vtanh.pop %v200
    %v218 = vtanh.pop %v203
    %v219 = vtanh.pop %v206
    %v220 = vtanh.pop %v209
    %v221 = vtanh.pop %v212
    %v222 = vld [vmem:[%s3] sm:$0xff]
    %v223 = vld [vmem:[%s3 + $0x8] sm:$0xff]
    %v224 = vld [vmem:[%s3 + $0x10] sm:$0xff]
    %v225 = vld [vmem:[%s3 + $0x18] sm:$0xff]
    %v226 = vld [vmem:[%s3 + $0x20] sm:$0xff]
    %v227 = vld [vmem:[%s3 + $0x28] sm:$0xff]
    %v228 = vld [vmem:[%s3 + $0x30] sm:$0xff]
    %v229 = vld [vmem:[%s3 + $0x38] sm:$0xff]
    %v230 = vld [vmem:[%s4] sm:$0xff]
    %v231 = vld [vmem:[%s4 + $0x8] sm:$0xff]
    %v232 = vld [vmem:[%s4 + $0x10] sm:$0xff]
    %v233 = vld [vmem:[%s4 + $0x18] sm:$0xff]
    %v234 = vld [vmem:[%s4 + $0x20] sm:$0xff]
    %v235 = vld [vmem:[%s4 + $0x28] sm:$0xff]
    %v236 = vld [vmem:[%s4 + $0x30] sm:$0xff]
    %v237 = vld [vmem:[%s4 + $0x38] sm:$0xff]
    %239 = vset.pattern.permute.xlu0 0
    %240 = vperm.xlu0 %239, %v230
    %v241 = vpop.permute.xlu0 %240
    %244 = vset.pattern.permute.xlu0 0
    %245 = vperm.xlu0 %244, %v231
    %v246 = vpop.permute.xlu0 %245
    %249 = vset.pattern.permute.xlu0 0
    %250 = vperm.xlu0 %249, %v232
    %v251 = vpop.permute.xlu0 %250
    %254 = vset.pattern.permute.xlu0 0
    %255 = vperm.xlu0 %254, %v233
    %v256 = vpop.permute.xlu0 %255
    %259 = vset.pattern.permute.xlu0 0
    %260 = vperm.xlu0 %259, %v234
    %v261 = vpop.permute.xlu0 %260
    %264 = vset.pattern.permute.xlu0 0
    %265 = vperm.xlu0 %264, %v235
    %v266 = vpop.permute.xlu0 %265
    %269 = vset.pattern.permute.xlu0 0
    %270 = vperm.xlu0 %269, %v236
    %v271 = vpop.permute.xlu0 %270
    %274 = vset.pattern.permute.xlu0 0
    %275 = vperm.xlu0 %274, %v237
    %v276 = vpop.permute.xlu0 %275
    %vm278 = vcmask 523264
    %v280 = vsel %vm278, %v222, 0
    %v283 = vsel %vm278, %v223, 0
    %v286 = vsel %vm278, %v224, 0
    %v289 = vsel %vm278, %v225, 0
    %v292 = vsel %vm278, %v226, 0
    %v295 = vsel %vm278, %v227, 0
    %v298 = vsel %vm278, %v228, 0
    %v301 = vsel %vm278, %v229, 0
    %303 = vmatpush.msra.mxu0 0.0
    %304 = vmatpush.msra.mxu0 0.0
    %305 = vmatpush.msra.mxu0 0.0
    %306 = vmatpush.msra.mxu0 0.0
    %307 = vmatpush.msra.mxu0 0.0
    %308 = vmatpush.msra.mxu0 0.0
    %309 = vmatpush.msra.mxu0 0.0
    %310 = vmatpush.msra.mxu0 0.0
    %311 = vmatpush.msra.mxu0 %v221
    %312 = vmatpush.msra.mxu0 %v220
    %313 = vmatpush.msra.mxu0 %v219
    %314 = vmatpush.msra.mxu0 %v218
    %315 = vmatpush.msra.mxu0 %v217
    %316 = vmatpush.msra.mxu0 %v216
    %317 = vmatpush.msra.mxu0 %v215
    %318 = vmatpush.msra.mxu0 %v214
    %319 = vmatmul.f32.gmra.mxu0 %v280
    %v320 = vpop.f32.mrf.mxu0
    %v321 = vadd.f32 %v241, %v320
    %322 = vmatmul.f32.gmra.mxu0 %v283
    %v323 = vpop.f32.mrf.mxu0
    %v324 = vadd.f32 %v246, %v323
    %325 = vmatmul.f32.gmra.mxu0 %v286
    %v326 = vpop.f32.mrf.mxu0
    %v327 = vadd.f32 %v251, %v326
    %328 = vmatmul.f32.gmra.mxu0 %v289
    %v329 = vpop.f32.mrf.mxu0
    %v330 = vadd.f32 %v256, %v329
    %331 = vmatmul.f32.gmra.mxu0 %v292
    %v332 = vpop.f32.mrf.mxu0
    %v333 = vadd.f32 %v261, %v332
    %334 = vmatmul.f32.gmra.mxu0 %v295
    %v335 = vpop.f32.mrf.mxu0
    %v336 = vadd.f32 %v266, %v335
    %337 = vmatmul.f32.gmra.mxu0 %v298
    %v338 = vpop.f32.mrf.mxu0
    %v339 = vadd.f32 %v271, %v338
    %340 = vmatmul.f32.gmra.mxu0 %v301
    %v341 = vpop.f32.mrf.mxu0
    %v342 = vadd.f32 %v276, %v341
    %343 = vdwg.mxu0
    %v344 = vtanh.pop %v321
    %v345 = vtanh.pop %v324
    %v346 = vtanh.pop %v327
    %v347 = vtanh.pop %v330
    %v348 = vtanh.pop %v333
    %v349 = vtanh.pop %v336
    %v350 = vtanh.pop %v339
    %v351 = vtanh.pop %v342
    %v352 = vld [vmem:[%s5] sm:$0xff]
    %v353 = vld [vmem:[%s5 + $0x8] sm:$0xff]
    %v354 = vld [vmem:[%s5 + $0x10] sm:$0xff]
    %v355 = vld [vmem:[%s5 + $0x18] sm:$0xff]
    %v356 = vld [vmem:[%s5 + $0x20] sm:$0xff]
    %v357 = vld [vmem:[%s5 + $0x28] sm:$0xff]
    %v358 = vld [vmem:[%s5 + $0x30] sm:$0xff]
    %v359 = vld [vmem:[%s5 + $0x38] sm:$0xff]
    %361 = vset.pattern.permute.xlu0 0
    %362 = vperm.xlu0 %361, %v352
    %v363 = vpop.permute.xlu0 %362
    %366 = vset.pattern.permute.xlu0 0
    %367 = vperm.xlu0 %366, %v353
    %v368 = vpop.permute.xlu0 %367
    %371 = vset.pattern.permute.xlu0 0
    %372 = vperm.xlu0 %371, %v354
    %v373 = vpop.permute.xlu0 %372
    %376 = vset.pattern.permute.xlu0 0
    %377 = vperm.xlu0 %376, %v355
    %v378 = vpop.permute.xlu0 %377
    %381 = vset.pattern.permute.xlu0 0
    %382 = vperm.xlu0 %381, %v356
    %v383 = vpop.permute.xlu0 %382
    %386 = vset.pattern.permute.xlu0 0
    %387 = vperm.xlu0 %386, %v357
    %v388 = vpop.permute.xlu0 %387
    %391 = vset.pattern.permute.xlu0 0
    %392 = vperm.xlu0 %391, %v358
    %v393 = vpop.permute.xlu0 %392
    %396 = vset.pattern.permute.xlu0 0
    %397 = vperm.xlu0 %396, %v359
    %v398 = vpop.permute.xlu0 %397
    %v400 = vmul.f32 %v344, %v363
    %v401 = vmul.f32 %v345, %v368
    %v402 = vmul.f32 %v346, %v373
    %v403 = vmul.f32 %v347, %v378
    %v404 = vmul.f32 %v348, %v383
    %v405 = vmul.f32 %v349, %v388
    %v406 = vmul.f32 %v350, %v393
    %v407 = vmul.f32 %v351, %v398
    %v408 = vadd.f32 %v400, %v401
    %v409 = vadd.f32 %v408, %v402
    %v410 = vadd.f32 %v409, %v403
    %v411 = vadd.f32 %v410, %v404
    %v412 = vadd.f32 %v411, %v405
    %v413 = vadd.f32 %v412, %v406
    %v414 = vadd.f32 %v413, %v407
    %v415 = vrot.slane %v414, 4
    %v416 = vadd.f32 %v414, %v415
    %v417 = vrot.slane %v416, 2
    %v418 = vadd.f32 %v416, %v417
    %v419 = vrot.slane %v418, 1
    %v420 = vadd.f32 %v418, %v419
    %s421 = sld [smem:[#allocation2]]
    %v422 = vstv %s421
    %v423 = vadd.f32 %v420, %v422
    %424 = vst [vmem:[#allocation3] sm:$0x1] %v423
    // Predicated region
    $region30: #{tpu_custom_call.1} parent=1 // pred_check
      _
    $region31: #{tpu_custom_call.1} parent=1 // pred_check_branch
      %426 = sbr.rel (0) target = $region33
    $region32: #{tpu_custom_call.1} parent=1 // pred_region
      %428 = vsyncadd [#allocation4], 0
      %s430 = sshll.u32 [#allocation3], 4
      %s431 = int_to_ptr.vmem [resolvable:$true] %s430
      %s432 = sshll.u32 %s7, 4
      %s433 = int_to_ptr.hbm [resolvable:$true] %s432
      %435 = dma.vmem_to_hbm [thread:$0]  %s431, 16, %s433, [#allocation4]
    $region33: #{tpu_custom_call.1} parent=1 // pred_fallthru
      _
    // Predicated region
    $region34: #{tpu_custom_call.1} parent=1 // pred_check
      _
    $region35: #{tpu_custom_call.1} parent=1 // pred_check_branch
      %437 = sbr.rel (0) target = $region37
    $region36: #{tpu_custom_call.1} parent=1 // pred_region
      %439 = dma.done [#allocation4], 16
    $region37: #{tpu_custom_call.1} parent=1 // pred_fallthru
      _
    %440 = vsyncpa [#allocation4], 1

</llo_original>
